<compile_context>
chip_gen: v6e
topology: v6e:2x2x1
jax: 0.10.0
libtpu: 0.0.40
codegen_flags: <defaults>
</compile_context>

<pallas_src>
import jax
import jax.numpy as jnp
from jax.experimental import pallas as pl
from jax.experimental.pallas import tpu as pltpu

_LANE = 128
_TILE_PX_CAP = 4096  # 256-wide f32 output block = 4 MiB; ~8.5 MiB double-buffered


# ---------------------------------------------------------------------------
# Pallas kernel: one 1x1-conv block in channel-major (NCHW) layout
# ---------------------------------------------------------------------------
def _conv1x1_kernel(x_ref, w_ref, b_ref, o_ref):
    # x_ref: (K, tile_px)  w_ref: (Cout, K)  b_ref: (Cout, 1)  o_ref: (Cout, tile_px)
    acc = jnp.dot(w_ref[...], x_ref[...], preferred_element_type=jnp.float32)
    o_ref[...] = (acc + b_ref[...]).astype(o_ref.dtype)


def _choose_tile_px(P, B):
    """Pick pixel-tile width and (possibly padded) pixel extent.

    Prefers: no padding (lane-multiple divisor of P), large tiles (amortize
    per-grid-step overhead), and >=2 total grid steps (feed both v7x TCs).
    """
    if P % _LANE != 0:
        if P <= _TILE_PX_CAP:
            return P, P  # full-extent block: no pad, no output slice
        # TODO(synk): rare large-and-ragged pixel count; the out[..., :P] slice
        # re-streams the output once.  Fold into the consumer if it matters.
        P_pad = -(-P // _LANE) * _LANE
    else:
        P_pad = P
    tile = min(P_pad, _TILE_PX_CAP)
    tile -= tile % _LANE
    while P_pad % tile:
        tile -= _LANE  # largest lane-multiple divisor of P_pad that is <= cap
    if B * (P_pad // tile) < 2:
        for cand in range(tile - _LANE, _LANE - 1, -_LANE):
            if P_pad % cand == 0:
                tile = cand
                break
    return tile, P_pad


def _conv1x1_nchw(rows, w, b, *, out_dtype=None):
    """(B,K,P) x (Cout,K)^T + (Cout,1) -> (B,Cout,P_pad), tiled over (batch, pixels)."""
    B, K, P = rows.shape
    Cout = w.shape[0]
    if out_dtype is None:
        out_dtype = rows.dtype

    tile_px, P_pad = _choose_tile_px(P, B)
    if P_pad != P:
        rows = jnp.pad(rows, ((0, 0), (0, 0), (0, P_pad - P)))
    grid = (B, P_pad // tile_px)

    cost = pl.CostEstimate(
        flops=2 * B * P_pad * K * Cout,
        transcendentals=0,
        bytes_accessed=(B * K * P_pad * rows.dtype.itemsize
                        + w.size * w.dtype.itemsize
                        + b.size * b.dtype.itemsize
                        + B * Cout * P_pad * jnp.dtype(out_dtype).itemsize),
    )

    return pl.pallas_call(
        _conv1x1_kernel,
        out_shape=jax.ShapeDtypeStruct((B, Cout, P_pad), out_dtype),
        grid_spec=pltpu.PrefetchScalarGridSpec(
            num_scalar_prefetch=0,
            grid=grid,
            in_specs=[
                # Input blocks are tiny (K*tile_px*4 B); bump to
                # pipeline_mode=pl.Buffered(3) only if a profile shows exposed
                # input DMA.  Do NOT deepen buffering on the 256-wide output.
                pl.BlockSpec((None, K, tile_px), lambda bb, t: (bb, 0, t)),
                pl.BlockSpec((Cout, K), lambda bb, t: (0, 0)),
                pl.BlockSpec((Cout, 1), lambda bb, t: (0, 0)),
            ],
            out_specs=pl.BlockSpec((None, Cout, tile_px), lambda bb, t: (bb, 0, t)),
        ),
        compiler_params=pltpu.CompilerParams(
            dimension_semantics=("parallel", "parallel"),
            vmem_limit_bytes=32 * 1024 * 1024,
        ),
        cost_estimate=cost,
    )(rows, w, b)


# ---------------------------------------------------------------------------
# Parameters
# ---------------------------------------------------------------------------
def init_small_fpn_params(key, dtype=jnp.float32):
    """Deterministic synthetic parameters matching SmallFPN's shapes (PyTorch layout)."""
    k1, k2, k3, k4 = jax.random.split(key, 4)
    return {
        "conv1_w": jax.random.normal(k1, (256, 3), dtype) * 0.1,     # (Cout, Cin)
        "conv1_b": jax.random.normal(k2, (256,), dtype) * 0.1,
        "conv2_w": jax.random.normal(k3, (256, 256), dtype) * 0.05,
        "conv2_b": jax.random.normal(k4, (256,), dtype) * 0.05,
    }


def prepare_params(params, pad_cin_to=8, dtype=None):
    """One-time prep: exact fold of the two 1x1 convs.

    conv2(conv1(x)) = (W2 @ W1) x[::4,::4] + (W2 @ b1 + b2).
    Weight is kept as (Cout, Cin_pad) so the kernel's dot is (M,K)x(K,N) with
    the output already channel-major (NCHW) -- no transpose anywhere.
    Pass dtype=jnp.bfloat16 to halve output/weight bytes (numerics tradeoff).
    """
    w1, b1 = params["conv1_w"], params["conv1_b"]
    w2, b2 = params["conv2_w"], params["conv2_b"]
    wf = jnp.dot(w2, w1)                        # (256, 3)
    bf = jnp.dot(w2, b1) + b2                   # (256,)
    cin = wf.shape[1]
    k = max(pad_cin_to, cin)
    wf = jnp.pad(wf, ((0, 0), (0, k - cin)))    # (256, 8)
    if dtype is not None:
        wf, bf = wf.astype(dtype), bf.astype(dtype)
    return {"wf": wf, "bf": bf.reshape(-1, 1)}


# ---------------------------------------------------------------------------
# Forward pass
# ---------------------------------------------------------------------------
@jax.jit
def small_fpn_forward(prepared, x_nchw):
    """Fused SmallFPN forward: (B,3,H,W) NCHW -> (B,256,ceil(H/4),ceil(W/4)) NCHW."""
    wf, bf = prepared["wf"], prepared["bf"]
    Cout, K = wf.shape
    B, C, _, _ = x_nchw.shape
    # Stride-4 subsample FIRST (only the needed pixels are touched), then a free
    # contiguous reshape; zero-pad Cin 3->8 (a few % of output bytes).
    # TODO(synk): the stride-4 gather itself stays as XLA glue; fold into the
    # kernel with a strided/Element index_map only if it ever shows in profiles.
    xs = x_nchw[:, :, ::4, ::4]
    Ho, Wo = xs.shape[2], xs.shape[3]
    P = Ho * Wo
    rows = xs.reshape(B, C, P)
    if K > C:
        rows = jnp.pad(rows, ((0, 0), (0, K - C), (0, 0)))
    out = _conv1x1_nchw(rows, wf, bf)           # (B, 256, P_pad), already NCHW layout
    if out.shape[-1] != P:
        out = out[:, :, :P]
    return out.reshape(B, Cout, Ho, Wo)


def small_fpn_reference(params, x_nchw):
    """Pure-JAX reference of the same math (two stride-2 1x1 convs)."""
    def conv(x, w, b):
        xs = x[:, :, ::2, ::2]
        return jnp.einsum("bchw,oc->bohw", xs, w) + b[None, :, None, None]
    return conv(conv(x_nchw, params["conv1_w"], params["conv1_b"]),
                params["conv2_w"], params["conv2_b"])


if __name__ == "__main__":
    key = jax.random.PRNGKey(0)
    pkey, xkey, xkey2 = jax.random.split(key, 3)

    params = init_small_fpn_params(pkey)
    prepared = prepare_params(params)

    # Small NCHW input matching the PyTorch module (3 input channels).
    x = jax.random.normal(xkey, (2, 3, 16, 16), jnp.float32)
    out = jax.block_until_ready(small_fpn_forward(prepared, x))
    assert out.shape == (2, 256, 4, 4), out.shape
    ref = jax.block_until_ready(small_fpn_reference(params, x))
    assert jnp.allclose(out, ref, atol=1e-4, rtol=1e-4), \
        float(jnp.max(jnp.abs(out - ref)))

    # Second shape exercises the lane-aligned tiling / multi-step-grid path.
    x2 = jax.random.normal(xkey2, (1, 3, 128, 128), jnp.float32)
    out2 = jax.block_until_ready(small_fpn_forward(prepared, x2))
    assert out2.shape == (1, 256, 32, 32), out2.shape
    ref2 = jax.block_until_ready(small_fpn_reference(params, x2))
    assert jnp.allclose(out2, ref2, atol=1e-4, rtol=1e-4), \
        float(jnp.max(jnp.abs(out2 - ref2)))

    print("KERNEL_OK")
</pallas_src>

<mosaic_0001>
module attributes {stable_mosaic.version = 11 : i64} {
  func.func @_conv1x1_kernel(%arg0: i32, %arg1: i32, %arg2: memref<1x8x16xf32, #tpu.memory_space<vmem>>, %arg3: memref<256x8xf32, #tpu.memory_space<vmem>>, %arg4: memref<256x1xf32, #tpu.memory_space<vmem>>, %arg5: memref<1x256x16xf32, #tpu.memory_space<vmem>>) attributes {dimension_semantics = [#tpu.dimension_semantics<parallel>, #tpu.dimension_semantics<parallel>], iteration_bounds = array<i64: 2, 1>, scalar_prefetch = 0 : i64, scratch_operands = 0 : i64, tpu.core_type = #tpu.core_type<tc>, window_params = [{transform_indices = @transform_0, window_bounds = array<i64: 1, 8, 16>}, {pipeline_mode = #tpu.pipeline_mode<synchronous>, transform_indices = @transform_1, window_bounds = array<i64: 256, 8>}, {pipeline_mode = #tpu.pipeline_mode<synchronous>, transform_indices = @transform_2, window_bounds = array<i64: 256, 1>}, {transform_indices = @transform_3, window_bounds = array<i64: 1, 256, 16>}]} {
    %c0 = arith.constant 0 : index
    %c0_0 = arith.constant 0 : index
    %0 = vector.load %arg3[%c0, %c0_0] : memref<256x8xf32, #tpu.memory_space<vmem>>, vector<256x8xf32>
    %c0_1 = arith.constant 0 : index
    %c0_2 = arith.constant 0 : index
    %c0_3 = arith.constant 0 : index
    %1 = vector.load %arg2[%c0_1, %c0_2, %c0_3] : memref<1x8x16xf32, #tpu.memory_space<vmem>>, vector<1x8x16xf32>
    %2 = vector.shape_cast %1 : vector<1x8x16xf32> to vector<8x16xf32>
    %cst = arith.constant dense<0.000000e+00> : vector<256x16xf32>
    %3 = tpu.matmul %0, %2, %cst {dimension_numbers = #tpu.dot_dimension_numbers<[1], [0], [0], [1], [0, 0, 1, 1], [], []>} : vector<256x8xf32>, vector<8x16xf32>, vector<256x16xf32> -> vector<256x16xf32>
    %c0_4 = arith.constant 0 : index
    %c0_5 = arith.constant 0 : index
    %4 = vector.load %arg4[%c0_4, %c0_5] : memref<256x1xf32, #tpu.memory_space<vmem>>, vector<256x1xf32>
    %5 = vector.broadcast %4 : vector<256x1xf32> to vector<256x16xf32>
    %6 = arith.addf %3, %5 : vector<256x16xf32>
    %c0_6 = arith.constant 0 : index
    %c0_7 = arith.constant 0 : index
    %c0_8 = arith.constant 0 : index
    %7 = vector.load %arg5[%c0_6, %c0_7, %c0_8] : memref<1x256x16xf32, #tpu.memory_space<vmem>>, vector<1x256x16xf32>
    %8 = vector.shape_cast %7 : vector<1x256x16xf32> to vector<256x16xf32>
    %9 = vector.shape_cast %6 : vector<256x16xf32> to vector<1x256x16xf32>
    tpu.vector_store %arg5[%c0_6, %c0_7, %c0_8], %9 {strides = array<i32>} : memref<1x256x16xf32, #tpu.memory_space<vmem>>, vector<1x256x16xf32>,
    return
  }
  func.func @transform_0(%arg0: i32, %arg1: i32) -> (i32, i32, i32) {
    %c0_i32 = arith.constant 0 : i32
    %c0_i32_0 = arith.constant 0 : i32
    return %arg0, %c0_i32, %arg1 : i32, i32, i32
  }
  func.func @transform_1(%arg0: i32, %arg1: i32) -> (i32, i32) {
    %c0_i32 = arith.constant 0 : i32
    %c0_i32_0 = arith.constant 0 : i32
    %c0_i32_1 = arith.constant 0 : i32
    return %c0_i32, %c0_i32_0 : i32, i32
  }
  func.func @transform_2(%arg0: i32, %arg1: i32) -> (i32, i32) {
    %c0_i32 = arith.constant 0 : i32
    %c0_i32_0 = arith.constant 0 : i32
    %c0_i32_1 = arith.constant 0 : i32
    return %c0_i32, %c0_i32_0 : i32, i32
  }
  func.func @transform_3(%arg0: i32, %arg1: i32) -> (i32, i32, i32) {
    %c0_i32 = arith.constant 0 : i32
    %c0_i32_0 = arith.constant 0 : i32
    return %arg0, %c0_i32, %arg1 : i32, i32, i32
  }
}

</mosaic_0001>

<llo_original>
// kernel: small_fpn_forward.1
$region0: #{small_fpn_forward.1}
  #allocation0 [shape = 'u32[]', space=smem, size = 0x4, offset = 0x4, fixed_abs, tag = 'smem constant byte address 0x4 - core index']
  #allocation1 [shape = 'u32[144,128]{1,0:T(1,128)}', space=vmem, size = 0x12000, scoped, tag = 'internal scratch']
  %s0 = inlined_call_operand.vmem [shape: f32[2,8,16], index: 0, kind: input, shape index: {}]
  %s1 = inlined_call_operand.vmem [shape: f32[256,8], index: 1, kind: input, shape index: {}]
  %s2 = inlined_call_operand.vmem [shape: f32[256,1], index: 2, kind: input, shape index: {}]
  %s3 = inlined_call_operand.vmem [shape: f32[2,256,16], index: 3, kind: output, shape index: {}]
  %s4 = sld [smem:[#allocation0]]
  $region45: #{small_fpn_forward.1} parent=0
    _
  %s6 = ssub.s32 1, %s4
  %s7 = scalar_select 0, %s6, %s4
  loop: start=0, step=1, limit=4
  $region2: #{small_fpn_forward.1} parent=0 // loop_pre_header
    _
  $region3: #{small_fpn_forward.1} parent=0 // loop_header
    %s9 = sphi 0, %s13
    %p10 = scmp.ge.s32.totalorder %s9, 4
    %s16 = sphi 0, %s28
    %s17 = sphi 0, %s24
    %s18 = sphi 0, %s16
    %s19 = sphi 0, %s17
    %s20 = sphi 0, %s18
    %s21 = sphi 0, %s19
    %s33 = sphi 0, %s35
    %s36 = sphi 0, %s33
    %s37 = sphi 0, %s36
    %s53 = sphi 0, %s37
    %s57 = sphi 0, %s57
    %s59 = sphi 0, %s57
    %s60 = sphi 0, %s59
    %s74 = sphi 0, %s60
    %s78 = sphi 0, %s78
    %s80 = sphi 0, %s78
    %s81 = sphi 0, %s80
    %s95 = sphi 0, %s81
    %s103 = sphi 0, %s105
    %s106 = sphi 0, %s103
    %s107 = sphi 0, %s106
    %s123 = sphi 0, %s107
  $region4: #{small_fpn_forward.1} parent=0 // loop_header_branch
    %12 = sbr.rel (%p10) target = $region8
  $region5: #{small_fpn_forward.1} parent=0 // loop_body
    %s14 = ssub.s32 %s9, 1
    %s15 = ssub.s32 %s9, 2
    %s22 = sadd.s32 1, %s17
    %p23 = scmp.ge.s32.totalorder %s22, 1
    %s24 = scalar_select %p23, 0, %s22
    %s25 = sadd.s32 1, %s16
    %s26 = scalar_select %p23, %s25, %s16
    %p27 = scmp.ge.s32.totalorder %s26, 2
    %s28 = scalar_select %p27, 0, %s26
    %s29 = ssub.s32 %s16, %s28
    %s30 = ssub.s32 %s17, %s24
    %s31 = sor.u32 %s29, %s30
    %p32 = scmp.eq.s32.totalorder %s31, 0
    %s34 = sadd.s32 %s33, 1
    %s35 = scalar_select %p32, %s33, %s34
    %p38 = pneg %p32
    %p39 = scmp.eq.s32.totalorder %s9, 1
    %p40 = por %p38, %p39
    %p41 = scmp.ne.s32.totalorder %s33, %s36
    %p42 = scmp.eq.s32.totalorder %s9, 0
    %p43 = por %p41, %p42
    %p44 = scmp.ne.s32.totalorder %s33, %s36
    %p45 = scmp.eq.s32.totalorder %s14, 1
    %p46 = por %p44, %p45
    %p47 = scmp.ne.s32.totalorder %s36, %s37
    %p48 = scmp.eq.s32.totalorder %s14, 0
    %p49 = por %p47, %p48
    %p50 = scmp.ne.s32.totalorder %s36, %s37
    %p51 = scmp.eq.s32.totalorder %s15, 1
    %p52 = por %p50, %p51
    %p54 = scmp.ne.s32.totalorder %s37, %s53
    %p55 = scmp.eq.s32.totalorder %s15, 0
    %p56 = por %p54, %p55
    %s58 = sadd.s32 %s57, 1
    %p61 = scmp.eq.s32.totalorder %s9, 1
    %p62 = scmp.ne.s32.totalorder %s57, %s59
    %p63 = scmp.eq.s32.totalorder %s9, 0
    %p64 = por %p62, %p63
    %p65 = scmp.ne.s32.totalorder %s57, %s59
    %p66 = scmp.eq.s32.totalorder %s14, 1
    %p67 = por %p65, %p66
    %p68 = scmp.ne.s32.totalorder %s59, %s60
    %p69 = scmp.eq.s32.totalorder %s14, 0
    %p70 = por %p68, %p69
    %p71 = scmp.ne.s32.totalorder %s59, %s60
    %p72 = scmp.eq.s32.totalorder %s15, 1
    %p73 = por %p71, %p72
    %p75 = scmp.ne.s32.totalorder %s60, %s74
    %p76 = scmp.eq.s32.totalorder %s15, 0
    %p77 = por %p75, %p76
    %s79 = sadd.s32 %s78, 1
    %p82 = scmp.eq.s32.totalorder %s9, 1
    %p83 = scmp.ne.s32.totalorder %s78, %s80
    %p84 = scmp.eq.s32.totalorder %s9, 0
    %p85 = por %p83, %p84
    %p86 = scmp.ne.s32.totalorder %s78, %s80
    %p87 = scmp.eq.s32.totalorder %s14, 1
    %p88 = por %p86, %p87
    %p89 = scmp.ne.s32.totalorder %s80, %s81
    %p90 = scmp.eq.s32.totalorder %s14, 0
    %p91 = por %p89, %p90
    %p92 = scmp.ne.s32.totalorder %s80, %s81
    %p93 = scmp.eq.s32.totalorder %s15, 1
    %p94 = por %p92, %p93
    %p96 = scmp.ne.s32.totalorder %s81, %s95
    %p97 = scmp.eq.s32.totalorder %s15, 0
    %p98 = por %p96, %p97
    %s99 = ssub.s32 %s16, %s28
    %s100 = ssub.s32 %s17, %s24
    %s101 = sor.u32 %s99, %s100
    %p102 = scmp.eq.s32.totalorder %s101, 0
    %s104 = sadd.s32 %s103, 1
    %s105 = scalar_select %p102, %s103, %s104
    %p108 = pneg %p102
    %p109 = scmp.eq.s32.totalorder %s9, 1
    %p110 = por %p108, %p109
    %p111 = scmp.ne.s32.totalorder %s103, %s106
    %p112 = scmp.eq.s32.totalorder %s9, 0
    %p113 = por %p111, %p112
    %p114 = scmp.ne.s32.totalorder %s103, %s106
    %p115 = scmp.eq.s32.totalorder %s14, 1
    %p116 = por %p114, %p115
    %p117 = scmp.ne.s32.totalorder %s106, %s107
    %p118 = scmp.eq.s32.totalorder %s14, 0
    %p119 = por %p117, %p118
    %p120 = scmp.ne.s32.totalorder %s106, %s107
    %p121 = scmp.eq.s32.totalorder %s15, 1
    %p122 = por %p120, %p121
    %p124 = scmp.ne.s32.totalorder %s107, %s123
    %p125 = scmp.eq.s32.totalorder %s15, 0
    %p126 = por %p124, %p125
    %p127 = scmp.le.s32.totalorder 1, %s9
    %p128 = scmp.lt.s32.totalorder %s9, 3
    %p129 = pnand %p127, %p128
    %p130 = pneg %p129
    // Predicated region
    $region9: #{small_fpn_forward.1} parent=5 // pred_check
      _
    $region10: #{small_fpn_forward.1} parent=5 // pred_check_branch
      %132 = sbr.rel (%p129) target = $region12
    $region11: #{small_fpn_forward.1} parent=5 // pred_region
      %s133 = ssub.s32 %s9, 1
      // Predicated region
      $region13: #{small_fpn_forward.1} parent=11 // pred_check
        %p134 = pneg %p70
      $region14: #{small_fpn_forward.1} parent=11 // pred_check_branch
        %136 = sbr.rel (%p134) target = $region16
      $region15: #{small_fpn_forward.1} parent=11 // pred_region
        _
      $region16: #{small_fpn_forward.1} parent=11 // pred_fallthru
        _
      // Predicated region
      $region17: #{small_fpn_forward.1} parent=11 // pred_check
        %p137 = pneg %p91
      $region18: #{small_fpn_forward.1} parent=11 // pred_check_branch
        %139 = sbr.rel (%p137) target = $region20
      $region19: #{small_fpn_forward.1} parent=11 // pred_region
        _
      $region20: #{small_fpn_forward.1} parent=11 // pred_fallthru
        _
    $region12: #{small_fpn_forward.1} parent=5 // pred_fallthru
      _
    %p140 = scmp.lt.s32.totalorder %s9, 2
    // Predicated region
    $region21: #{small_fpn_forward.1} parent=5 // pred_check
      %p141 = pneg %p140
    $region22: #{small_fpn_forward.1} parent=5 // pred_check_branch
      %143 = sbr.rel (%p141) target = $region24
    $region23: #{small_fpn_forward.1} parent=5 // pred_region
      // Predicated region
      $region25: #{small_fpn_forward.1} parent=23 // pred_check
        %p144 = pneg %p43
      $region26: #{small_fpn_forward.1} parent=23 // pred_check_branch
        %146 = sbr.rel (%p144) target = $region28
      $region27: #{small_fpn_forward.1} parent=23 // pred_region
        %p147 = scmp.lt.s32.totalorder %s16, 1
        %s148 = scalar_select %p147, %s16, 1
        %p149 = scmp.lt.s32.totalorder %s17, 0
        %s150 = scalar_select %p149, %s17, 0
        %s151 = sadd.s32 %s150, %s148
        %s152 = smul.addr %s151, 8
        %s153 = scalar_lea.vmem %s0, %s152
      $region28: #{small_fpn_forward.1} parent=23 // pred_fallthru
        _
    $region24: #{small_fpn_forward.1} parent=5 // pred_fallthru
      _
    %p154 = scmp.le.s32.totalorder 1, %s9
    %p155 = scmp.lt.s32.totalorder %s9, 3
    %p156 = pnand %p154, %p155
    %p157 = pneg %p156
    // Predicated region
    $region29: #{small_fpn_forward.1} parent=5 // pred_check
      _
    $region30: #{small_fpn_forward.1} parent=5 // pred_check_branch
      %159 = sbr.rel (%p156) target = $region32
    $region31: #{small_fpn_forward.1} parent=5 // pred_region
      %s160 = ssub.s32 %s9, 1
      %p161 = scmp.lt.s32.totalorder %s18, 1
      %s162 = scalar_select %p161, %s18, 1
      %p163 = scmp.lt.s32.totalorder %s19, 0
      %s164 = scalar_select %p163, %s19, 0
      %s165 = sadd.s32 %s164, %s162
      %s166 = smul.addr %s165, 8
      %s167 = scalar_lea.vmem %s0, %s166
      %p168 = pneg %p49
      %p169 = pneg %p46
      %p170 = pneg %p70
      %p171 = pneg %p67
      %p172 = pneg %p91
      %p173 = pneg %p88
      %p174 = pneg %p119
      %p175 = pneg %p116
      %p176 = scmp.lt.s32.totalorder %s18, 1
      %s177 = scalar_select %p176, %s18, 1
      %p178 = scmp.lt.s32.totalorder %s19, 0
      %s179 = scalar_select %p178, %s19, 0
      %s180 = smul.addr %s177, 32
      %s181 = sadd.s32 %s179, %s180
      %s182 = smul.addr %s181, 8
      %s183 = scalar_lea.vmem %s3, %s182
      %p184 = scmp.lt.s32.totalorder %s18, 1
      %s185 = scalar_select %p184, %s18, 1
      %p186 = scmp.lt.s32.totalorder %s19, 0
      %s187 = scalar_select %p186, %s19, 0
      %s188 = sadd.s32 %s187, %s185
      %s189 = smul.addr %s188, 8
      %s190 = scalar_lea.vmem %s0, %s189
      %p191 = scmp.lt.s32.totalorder %s18, 1
      %s192 = scalar_select %p191, %s18, 1
      %p193 = scmp.lt.s32.totalorder %s19, 0
      %s194 = scalar_select %p193, %s19, 0
      %s195 = smul.addr %s192, 32
      %s196 = sadd.s32 %s194, %s195
      %s197 = smul.addr %s196, 8
      %s198 = scalar_lea.vmem %s3, %s197
      %v199 = vld [vmem:[%s1] sm:$0xff]
      %v200 = vld [vmem:[%s1 + $0x8] sm:$0xff]
      %v201 = vld [vmem:[%s1 + $0x10] sm:$0xff]
      %v202 = vld [vmem:[%s1 + $0x18] sm:$0xff]
      %v203 = vld [vmem:[%s1 + $0x20] sm:$0xff]
      %v204 = vld [vmem:[%s1 + $0x28] sm:$0xff]
      %v205 = vld [vmem:[%s1 + $0x30] sm:$0xff]
      %v206 = vld [vmem:[%s1 + $0x38] sm:$0xff]
      %v207 = vld [vmem:[%s1 + $0x40] sm:$0xff]
      %v208 = vld [vmem:[%s1 + $0x48] sm:$0xff]
      %v209 = vld [vmem:[%s1 + $0x50] sm:$0xff]
      %v210 = vld [vmem:[%s1 + $0x58] sm:$0xff]
      %v211 = vld [vmem:[%s1 + $0x60] sm:$0xff]
      %v212 = vld [vmem:[%s1 + $0x68] sm:$0xff]
      %v213 = vld [vmem:[%s1 + $0x70] sm:$0xff]
      %v214 = vld [vmem:[%s1 + $0x78] sm:$0xff]
      %v215 = vld [vmem:[%s1 + $0x80] sm:$0xff]
      %v216 = vld [vmem:[%s1 + $0x88] sm:$0xff]
      %v217 = vld [vmem:[%s1 + $0x90] sm:$0xff]
      %v218 = vld [vmem:[%s1 + $0x98] sm:$0xff]
      %v219 = vld [vmem:[%s1 + $0xa0] sm:$0xff]
      %v220 = vld [vmem:[%s1 + $0xa8] sm:$0xff]
      %v221 = vld [vmem:[%s1 + $0xb0] sm:$0xff]
      %v222 = vld [vmem:[%s1 + $0xb8] sm:$0xff]
      %v223 = vld [vmem:[%s1 + $0xc0] sm:$0xff]
      %v224 = vld [vmem:[%s1 + $0xc8] sm:$0xff]
      %v225 = vld [vmem:[%s1 + $0xd0] sm:$0xff]
      %v226 = vld [vmem:[%s1 + $0xd8] sm:$0xff]
      %v227 = vld [vmem:[%s1 + $0xe0] sm:$0xff]
      %v228 = vld [vmem:[%s1 + $0xe8] sm:$0xff]
      %v229 = vld [vmem:[%s1 + $0xf0] sm:$0xff]
      %v230 = vld [vmem:[%s1 + $0xf8] sm:$0xff]
      %v231 = vld [vmem:[%s190] sm:$0xff]
      %v232 = vld [vmem:[%s2] sm:$0xff]
      %v233 = vld [vmem:[%s2 + $0x8] sm:$0xff]
      %v234 = vld [vmem:[%s2 + $0x10] sm:$0xff]
      %v235 = vld [vmem:[%s2 + $0x18] sm:$0xff]
      %v236 = vld [vmem:[%s2 + $0x20] sm:$0xff]
      %v237 = vld [vmem:[%s2 + $0x28] sm:$0xff]
      %v238 = vld [vmem:[%s2 + $0x30] sm:$0xff]
      %v239 = vld [vmem:[%s2 + $0x38] sm:$0xff]
      %v240 = vld [vmem:[%s2 + $0x40] sm:$0xff]
      %v241 = vld [vmem:[%s2 + $0x48] sm:$0xff]
      %v242 = vld [vmem:[%s2 + $0x50] sm:$0xff]
      %v243 = vld [vmem:[%s2 + $0x58] sm:$0xff]
      %v244 = vld [vmem:[%s2 + $0x60] sm:$0xff]
      %v245 = vld [vmem:[%s2 + $0x68] sm:$0xff]
      %v246 = vld [vmem:[%s2 + $0x70] sm:$0xff]
      %v247 = vld [vmem:[%s2 + $0x78] sm:$0xff]
      %v248 = vld [vmem:[%s2 + $0x80] sm:$0xff]
      %v249 = vld [vmem:[%s2 + $0x88] sm:$0xff]
      %v250 = vld [vmem:[%s2 + $0x90] sm:$0xff]
      %v251 = vld [vmem:[%s2 + $0x98] sm:$0xff]
      %v252 = vld [vmem:[%s2 + $0xa0] sm:$0xff]
      %v253 = vld [vmem:[%s2 + $0xa8] sm:$0xff]
      %v254 = vld [vmem:[%s2 + $0xb0] sm:$0xff]
      %v255 = vld [vmem:[%s2 + $0xb8] sm:$0xff]
      %v256 = vld [vmem:[%s2 + $0xc0] sm:$0xff]
      %v257 = vld [vmem:[%s2 + $0xc8] sm:$0xff]
      %v258 = vld [vmem:[%s2 + $0xd0] sm:$0xff]
      %v259 = vld [vmem:[%s2 + $0xd8] sm:$0xff]
      %v260 = vld [vmem:[%s2 + $0xe0] sm:$0xff]
      %v261 = vld [vmem:[%s2 + $0xe8] sm:$0xff]
      %v262 = vld [vmem:[%s2 + $0xf0] sm:$0xff]
      %v263 = vld [vmem:[%s2 + $0xf8] sm:$0xff]
      %265 = vset.pattern.permute.xlu0 0
      %266 = vperm.xlu0 %265, %v232
      %v267 = vpop.permute.xlu0 %266
      %270 = vset.pattern.permute.xlu0 0
      %271 = vperm.xlu0 %270, %v233
      %v272 = vpop.permute.xlu0 %271
      %275 = vset.pattern.permute.xlu0 0
      %276 = vperm.xlu0 %275, %v234
      %v277 = vpop.permute.xlu0 %276
      %280 = vset.pattern.permute.xlu0 0
      %281 = vperm.xlu0 %280, %v235
      %v282 = vpop.permute.xlu0 %281
      %285 = vset.pattern.permute.xlu0 0
      %286 = vperm.xlu0 %285, %v236
      %v287 = vpop.permute.xlu0 %286
      %290 = vset.pattern.permute.xlu0 0
      %291 = vperm.xlu0 %290, %v237
      %v292 = vpop.permute.xlu0 %291
      %295 = vset.pattern.permute.xlu0 0
      %296 = vperm.xlu0 %295, %v238
      %v297 = vpop.permute.xlu0 %296
      %300 = vset.pattern.permute.xlu0 0
      %301 = vperm.xlu0 %300, %v239
      %v302 = vpop.permute.xlu0 %301
      %305 = vset.pattern.permute.xlu0 0
      %306 = vperm.xlu0 %305, %v240
      %v307 = vpop.permute.xlu0 %306
      %310 = vset.pattern.permute.xlu0 0
      %311 = vperm.xlu0 %310, %v241
      %v312 = vpop.permute.xlu0 %311
      %315 = vset.pattern.permute.xlu0 0
      %316 = vperm.xlu0 %315, %v242
      %v317 = vpop.permute.xlu0 %316
      %320 = vset.pattern.permute.xlu0 0
      %321 = vperm.xlu0 %320, %v243
      %v322 = vpop.permute.xlu0 %321
      %325 = vset.pattern.permute.xlu0 0
      %326 = vperm.xlu0 %325, %v244
      %v327 = vpop.permute.xlu0 %326
      %330 = vset.pattern.permute.xlu0 0
      %331 = vperm.xlu0 %330, %v245
      %v332 = vpop.permute.xlu0 %331
      %335 = vset.pattern.permute.xlu0 0
      %336 = vperm.xlu0 %335, %v246
      %v337 = vpop.permute.xlu0 %336
      %340 = vset.pattern.permute.xlu0 0
      %341 = vperm.xlu0 %340, %v247
      %v342 = vpop.permute.xlu0 %341
      %345 = vset.pattern.permute.xlu0 0
      %346 = vperm.xlu0 %345, %v248
      %v347 = vpop.permute.xlu0 %346
      %350 = vset.pattern.permute.xlu0 0
      %351 = vperm.xlu0 %350, %v249
      %v352 = vpop.permute.xlu0 %351
      %355 = vset.pattern.permute.xlu0 0
      %356 = vperm.xlu0 %355, %v250
      %v357 = vpop.permute.xlu0 %356
      %360 = vset.pattern.permute.xlu0 0
      %361 = vperm.xlu0 %360, %v251
      %v362 = vpop.permute.xlu0 %361
      %365 = vset.pattern.permute.xlu0 0
      %366 = vperm.xlu0 %365, %v252
      %v367 = vpop.permute.xlu0 %366
      %370 = vset.pattern.permute.xlu0 0
      %371 = vperm.xlu0 %370, %v253
      %v372 = vpop.permute.xlu0 %371
      %375 = vset.pattern.permute.xlu0 0
      %376 = vperm.xlu0 %375, %v254
      %v377 = vpop.permute.xlu0 %376
      %380 = vset.pattern.permute.xlu0 0
      %381 = vperm.xlu0 %380, %v255
      %v382 = vpop.permute.xlu0 %381
      %385 = vset.pattern.permute.xlu0 0
      %386 = vperm.xlu0 %385, %v256
      %v387 = vpop.permute.xlu0 %386
      %390 = vset.pattern.permute.xlu0 0
      %391 = vperm.xlu0 %390, %v257
      %v392 = vpop.permute.xlu0 %391
      %395 = vset.pattern.permute.xlu0 0
      %396 = vperm.xlu0 %395, %v258
      %v397 = vpop.permute.xlu0 %396
      %400 = vset.pattern.permute.xlu0 0
      %401 = vperm.xlu0 %400, %v259
      %v402 = vpop.permute.xlu0 %401
      %405 = vset.pattern.permute.xlu0 0
      %406 = vperm.xlu0 %405, %v260
      %v407 = vpop.permute.xlu0 %406
      %410 = vset.pattern.permute.xlu0 0
      %411 = vperm.xlu0 %410, %v261
      %v412 = vpop.permute.xlu0 %411
      %415 = vset.pattern.permute.xlu0 0
      %416 = vperm.xlu0 %415, %v262
      %v417 = vpop.permute.xlu0 %416
      %420 = vset.pattern.permute.xlu0 0
      %421 = vperm.xlu0 %420, %v263
      %v422 = vpop.permute.xlu0 %421
      %vm424 = vcmask 64512
      %v426 = vsel %vm424, %v199, 0
      %v429 = vsel %vm424, %v200, 0
      %v432 = vsel %vm424, %v201, 0
      %v435 = vsel %vm424, %v202, 0
      %v438 = vsel %vm424, %v203, 0
      %v441 = vsel %vm424, %v204, 0
      %v444 = vsel %vm424, %v205, 0
      %v447 = vsel %vm424, %v206, 0
      %v450 = vsel %vm424, %v207, 0
      %v453 = vsel %vm424, %v208, 0
      %v456 = vsel %vm424, %v209, 0
      %v459 = vsel %vm424, %v210, 0
      %v462 = vsel %vm424, %v211, 0
      %v465 = vsel %vm424, %v212, 0
      %v468 = vsel %vm424, %v213, 0
      %v471 = vsel %vm424, %v214, 0
      %v474 = vsel %vm424, %v215, 0
      %v477 = vsel %vm424, %v216, 0
      %v480 = vsel %vm424, %v217, 0
      %v483 = vsel %vm424, %v218, 0
      %v486 = vsel %vm424, %v219, 0
      %v489 = vsel %vm424, %v220, 0
      %v492 = vsel %vm424, %v221, 0
      %v495 = vsel %vm424, %v222, 0
      %v498 = vsel %vm424, %v223, 0
      %v501 = vsel %vm424, %v224, 0
      %v504 = vsel %vm424, %v225, 0
      %v507 = vsel %vm424, %v226, 0
      %v510 = vsel %vm424, %v227, 0
      %v513 = vsel %vm424, %v228, 0
      %v516 = vsel %vm424, %v229, 0
      %v519 = vsel %vm424, %v230, 0
      %521 = vmatprep.subr.mxu0 0.0
      %522 = vmatpush1.msra.mxu0 0.0
      %523 = vmatprep.subr.mxu0 0.0
      %524 = vmatpush1.msra.mxu0 0.0
      %525 = vmatprep.subr.mxu0 0.0
      %526 = vmatpush1.msra.mxu0 0.0
      %527 = vmatprep.subr.mxu0 0.0
      %528 = vmatpush1.msra.mxu0 0.0
      %529 = vmatprep.subr.mxu0 0.0
      %530 = vmatpush1.msra.mxu0 0.0
      %531 = vmatprep.subr.mxu0 0.0
      %532 = vmatpush1.msra.mxu0 0.0
      %533 = vmatprep.subr.mxu0 0.0
      %534 = vmatpush1.msra.mxu0 0.0
      %535 = vmatprep.subr.mxu0 0.0
      %536 = vmatpush1.msra.mxu0 0.0
      %537 = vmatprep.subr.mxu0 0.0
      %538 = vmatpush1.msra.mxu0 0.0
      %539 = vmatprep.subr.mxu0 0.0
      %540 = vmatpush1.msra.mxu0 0.0
      %541 = vmatprep.subr.mxu0 0.0
      %542 = vmatpush1.msra.mxu0 0.0
      %543 = vmatprep.subr.mxu0 0.0
      %544 = vmatpush1.msra.mxu0 0.0
      %545 = vmatprep.subr.mxu0 0.0
      %546 = vmatpush1.msra.mxu0 0.0
      %547 = vmatprep.subr.mxu0 0.0
      %548 = vmatpush1.msra.mxu0 0.0
      %549 = vmatprep.subr.mxu0 0.0
      %550 = vmatpush1.msra.mxu0 0.0
      %551 = vmatprep.subr.mxu0 0.0
      %552 = vmatpush1.msra.mxu0 %v231
      %553 = vmatprep.subr.mxu0 0.0
      %554 = vmatpush2.msra.mxu0 0.0
      %555 = vmatprep.subr.mxu0 0.0
      %556 = vmatpush2.msra.mxu0 0.0
      %557 = vmatprep.subr.mxu0 0.0
      %558 = vmatpush2.msra.mxu0 0.0
      %559 = vmatprep.subr.mxu0 0.0
      %560 = vmatpush2.msra.mxu0 0.0
      %561 = vmatprep.subr.mxu0 0.0
      %562 = vmatpush2.msra.mxu0 0.0
      %563 = vmatprep.subr.mxu0 0.0
      %564 = vmatpush2.msra.mxu0 0.0
      %565 = vmatprep.subr.mxu0 0.0
      %566 = vmatpush2.msra.mxu0 0.0
      %567 = vmatprep.subr.mxu0 0.0
      %568 = vmatpush2.msra.mxu0 0.0
      %569 = vmatprep.subr.mxu0 0.0
      %570 = vmatpush2.msra.mxu0 0.0
      %571 = vmatprep.subr.mxu0 0.0
      %572 = vmatpush2.msra.mxu0 0.0
      %573 = vmatprep.subr.mxu0 0.0
      %574 = vmatpush2.msra.mxu0 0.0
      %575 = vmatprep.subr.mxu0 0.0
      %576 = vmatpush2.msra.mxu0 0.0
      %577 = vmatprep.subr.mxu0 0.0
      %578 = vmatpush2.msra.mxu0 0.0
      %579 = vmatprep.subr.mxu0 0.0
      %580 = vmatpush2.msra.mxu0 0.0
      %581 = vmatprep.subr.mxu0 0.0
      %582 = vmatpush2.msra.mxu0 0.0
      %583 = vmatprep.subr.mxu0 0.0
      %584 = vmatpush2.msra.mxu0 0.0
      %585 = vmatprep.mubr.f32.mxu0 0.0
      %586 = vmatmul.mubr.f32.gmra.mxu0 %v426
      %v587 = vpop.f32.mrf.mxu0
      %v588 = vadd.f32 %v267, %v587
      %v589 = vpop.f32.mrf.mxu0
      %590 = vmatprep.mubr.f32.mxu0 0.0
      %591 = vmatmul.mubr.f32.gmra.mxu0 %v429
      %v592 = vpop.f32.mrf.mxu0
      %v593 = vadd.f32 %v272, %v592
      %v594 = vpop.f32.mrf.mxu0
      %595 = vmatprep.mubr.f32.mxu0 0.0
      %596 = vmatmul.mubr.f32.gmra.mxu0 %v432
      %v597 = vpop.f32.mrf.mxu0
      %v598 = vadd.f32 %v277, %v597
      %v599 = vpop.f32.mrf.mxu0
      %600 = vmatprep.mubr.f32.mxu0 0.0
      %601 = vmatmul.mubr.f32.gmra.mxu0 %v435
      %v602 = vpop.f32.mrf.mxu0
      %v603 = vadd.f32 %v282, %v602
      %v604 = vpop.f32.mrf.mxu0
      %605 = vmatprep.mubr.f32.mxu0 0.0
      %606 = vmatmul.mubr.f32.gmra.mxu0 %v438
      %v607 = vpop.f32.mrf.mxu0
      %v608 = vadd.f32 %v287, %v607
      %v609 = vpop.f32.mrf.mxu0
      %610 = vmatprep.mubr.f32.mxu0 0.0
      %611 = vmatmul.mubr.f32.gmra.mxu0 %v441
      %v612 = vpop.f32.mrf.mxu0
      %v613 = vadd.f32 %v292, %v612
      %v614 = vpop.f32.mrf.mxu0
      %615 = vmatprep.mubr.f32.mxu0 0.0
      %616 = vmatmul.mubr.f32.gmra.mxu0 %v444
      %v617 = vpop.f32.mrf.mxu0
      %v618 = vadd.f32 %v297, %v617
      %v619 = vpop.f32.mrf.mxu0
      %620 = vmatprep.mubr.f32.mxu0 0.0
      %621 = vmatmul.mubr.f32.gmra.mxu0 %v447
      %v622 = vpop.f32.mrf.mxu0
      %v623 = vadd.f32 %v302, %v622
      %v624 = vpop.f32.mrf.mxu0
      %625 = vmatprep.mubr.f32.mxu0 0.0
      %626 = vmatmul.mubr.f32.gmra.mxu0 %v450
      %v627 = vpop.f32.mrf.mxu0
      %v628 = vadd.f32 %v307, %v627
      %v629 = vpop.f32.mrf.mxu0
      %630 = vmatprep.mubr.f32.mxu0 0.0
      %631 = vmatmul.mubr.f32.gmra.mxu0 %v453
      %v632 = vpop.f32.mrf.mxu0
      %v633 = vadd.f32 %v312, %v632
      %v634 = vpop.f32.mrf.mxu0
      %635 = vmatprep.mubr.f32.mxu0 0.0
      %636 = vmatmul.mubr.f32.gmra.mxu0 %v456
      %v637 = vpop.f32.mrf.mxu0
      %v638 = vadd.f32 %v317, %v637
      %v639 = vpop.f32.mrf.mxu0
      %640 = vmatprep.mubr.f32.mxu0 0.0
      %641 = vmatmul.mubr.f32.gmra.mxu0 %v459
      %v642 = vpop.f32.mrf.mxu0
      %v643 = vadd.f32 %v322, %v642
      %v644 = vpop.f32.mrf.mxu0
      %645 = vmatprep.mubr.f32.mxu0 0.0
      %646 = vmatmul.mubr.f32.gmra.mxu0 %v462
      %v647 = vpop.f32.mrf.mxu0
      %v648 = vadd.f32 %v327, %v647
      %v649 = vpop.f32.mrf.mxu0
      %650 = vmatprep.mubr.f32.mxu0 0.0
      %651 = vmatmul.mubr.f32.gmra.mxu0 %v465
      %v652 = vpop.f32.mrf.mxu0
      %v653 = vadd.f32 %v332, %v652
      %v654 = vpop.f32.mrf.mxu0
      %655 = vmatprep.mubr.f32.mxu0 0.0
      %656 = vmatmul.mubr.f32.gmra.mxu0 %v468
      %v657 = vpop.f32.mrf.mxu0
      %v658 = vadd.f32 %v337, %v657
      %v659 = vpop.f32.mrf.mxu0
      %660 = vmatprep.mubr.f32.mxu0 0.0
      %661 = vmatmul.mubr.f32.gmra.mxu0 %v471
      %v662 = vpop.f32.mrf.mxu0
      %v663 = vadd.f32 %v342, %v662
      %v664 = vpop.f32.mrf.mxu0
      %665 = vmatprep.mubr.f32.mxu0 0.0
      %666 = vmatmul.mubr.f32.gmra.mxu0 %v474
      %v667 = vpop.f32.mrf.mxu0
      %v668 = vadd.f32 %v347, %v667
      %v669 = vpop.f32.mrf.mxu0
      %670 = vmatprep.mubr.f32.mxu0 0.0
      %671 = vmatmul.mubr.f32.gmra.mxu0 %v477
      %v672 = vpop.f32.mrf.mxu0
      %v673 = vadd.f32 %v352, %v672
      %v674 = vpop.f32.mrf.mxu0
      %675 = vmatprep.mubr.f32.mxu0 0.0
      %676 = vmatmul.mubr.f32.gmra.mxu0 %v480
      %v677 = vpop.f32.mrf.mxu0
      %v678 = vadd.f32 %v357, %v677
      %v679 = vpop.f32.mrf.mxu0
      %680 = vmatprep.mubr.f32.mxu0 0.0
      %681 = vmatmul.mubr.f32.gmra.mxu0 %v483
      %v682 = vpop.f32.mrf.mxu0
      %v683 = vadd.f32 %v362, %v682
      %v684 = vpop.f32.mrf.mxu0
      %685 = vmatprep.mubr.f32.mxu0 0.0
      %686 = vmatmul.mubr.f32.gmra.mxu0 %v486
      %v687 = vpop.f32.mrf.mxu0
      %v688 = vadd.f32 %v367, %v687
      %v689 = vpop.f32.mrf.mxu0
      %690 = vmatprep.mubr.f32.mxu0 0.0
      %691 = vmatmul.mubr.f32.gmra.mxu0 %v489
      %v692 = vpop.f32.mrf.mxu0
      %v693 = vadd.f32 %v372, %v692
      %v694 = vpop.f32.mrf.mxu0
      %695 = vmatprep.mubr.f32.mxu0 0.0
      %696 = vmatmul.mubr.f32.gmra.mxu0 %v492
      %v697 = vpop.f32.mrf.mxu0
      %v698 = vadd.f32 %v377, %v697
      %v699 = vpop.f32.mrf.mxu0
      %700 = vmatprep.mubr.f32.mxu0 0.0
      %701 = vmatmul.mubr.f32.gmra.mxu0 %v495
      %v702 = vpop.f32.mrf.mxu0
      %v703 = vadd.f32 %v382, %v702
      %v704 = vpop.f32.mrf.mxu0
      %705 = vmatprep.mubr.f32.mxu0 0.0
      %706 = vmatmul.mubr.f32.gmra.mxu0 %v498
      %v707 = vpop.f32.mrf.mxu0
      %v708 = vadd.f32 %v387, %v707
      %v709 = vpop.f32.mrf.mxu0
      %710 = vmatprep.mubr.f32.mxu0 0.0
      %711 = vmatmul.mubr.f32.gmra.mxu0 %v501
      %v712 = vpop.f32.mrf.mxu0
      %v713 = vadd.f32 %v392, %v712
      %v714 = vpop.f32.mrf.mxu0
      %715 = vmatprep.mubr.f32.mxu0 0.0
      %716 = vmatmul.mubr.f32.gmra.mxu0 %v504
      %v717 = vpop.f32.mrf.mxu0
      %v718 = vadd.f32 %v397, %v717
      %v719 = vpop.f32.mrf.mxu0
      %720 = vmatprep.mubr.f32.mxu0 0.0
      %721 = vmatmul.mubr.f32.gmra.mxu0 %v507
      %v722 = vpop.f32.mrf.mxu0
      %v723 = vadd.f32 %v402, %v722
      %v724 = vpop.f32.mrf.mxu0
      %725 = vmatprep.mubr.f32.mxu0 0.0
      %726 = vmatmul.mubr.f32.gmra.mxu0 %v510
      %v727 = vpop.f32.mrf.mxu0
      %v728 = vadd.f32 %v407, %v727
      %v729 = vpop.f32.mrf.mxu0
      %730 = vmatprep.mubr.f32.mxu0 0.0
      %731 = vmatmul.mubr.f32.gmra.mxu0 %v513
      %v732 = vpop.f32.mrf.mxu0
      %v733 = vadd.f32 %v412, %v732
      %v734 = vpop.f32.mrf.mxu0
      %735 = vmatprep.mubr.f32.mxu0 0.0
      %736 = vmatmul.mubr.f32.gmra.mxu0 %v516
      %v737 = vpop.f32.mrf.mxu0
      %v738 = vadd.f32 %v417, %v737
      %v739 = vpop.f32.mrf.mxu0
      %740 = vmatprep.mubr.f32.mxu0 0.0
      %741 = vmatmul.mubr.f32.gmra.mxu0 %v519
      %v742 = vpop.f32.mrf.mxu0
      %v743 = vadd.f32 %v422, %v742
      %v744 = vpop.f32.mrf.mxu0
      %745 = vdwg.mxu0
      %vm746 = vcmask 130048
      %747 = vst.msk [vmem:[%s198] sm:$0xff] %vm746, %v588
      %748 = vst.msk [vmem:[%s198 + $0x8] sm:$0xff] %vm746, %v593
      %749 = vst.msk [vmem:[%s198 + $0x10] sm:$0xff] %vm746, %v598
      %750 = vst.msk [vmem:[%s198 + $0x18] sm:$0xff] %vm746, %v603
      %751 = vst.msk [vmem:[%s198 + $0x20] sm:$0xff] %vm746, %v608
      %752 = vst.msk [vmem:[%s198 + $0x28] sm:$0xff] %vm746, %v613
      %753 = vst.msk [vmem:[%s198 + $0x30] sm:$0xff] %vm746, %v618
      %754 = vst.msk [vmem:[%s198 + $0x38] sm:$0xff] %vm746, %v623
      %755 = vst.msk [vmem:[%s198 + $0x40] sm:$0xff] %vm746, %v628
      %756 = vst.msk [vmem:[%s198 + $0x48] sm:$0xff] %vm746, %v633
      %757 = vst.msk [vmem:[%s198 + $0x50] sm:$0xff] %vm746, %v638
      %758 = vst.msk [vmem:[%s198 + $0x58] sm:$0xff] %vm746, %v643
      %759 = vst.msk [vmem:[%s198 + $0x60] sm:$0xff] %vm746, %v648
      %760 = vst.msk [vmem:[%s198 + $0x68] sm:$0xff] %vm746, %v653
      %761 = vst.msk [vmem:[%s198 + $0x70] sm:$0xff] %vm746, %v658
      %762 = vst.msk [vmem:[%s198 + $0x78] sm:$0xff] %vm746, %v663
      %763 = vst.msk [vmem:[%s198 + $0x80] sm:$0xff] %vm746, %v668
      %764 = vst.msk [vmem:[%s198 + $0x88] sm:$0xff] %vm746, %v673
      %765 = vst.msk [vmem:[%s198 + $0x90] sm:$0xff] %vm746, %v678
      %766 = vst.msk [vmem:[%s198 + $0x98] sm:$0xff] %vm746, %v683
      %767 = vst.msk [vmem:[%s198 + $0xa0] sm:$0xff] %vm746, %v688
      %768 = vst.msk [vmem:[%s198 + $0xa8] sm:$0xff] %vm746, %v693
      %769 = vst.msk [vmem:[%s198 + $0xb0] sm:$0xff] %vm746, %v698
      %770 = vst.msk [vmem:[%s198 + $0xb8] sm:$0xff] %vm746, %v703
      %771 = vst.msk [vmem:[%s198 + $0xc0] sm:$0xff] %vm746, %v708
      %772 = vst.msk [vmem:[%s198 + $0xc8] sm:$0xff] %vm746, %v713
      %773 = vst.msk [vmem:[%s198 + $0xd0] sm:$0xff] %vm746, %v718
      %774 = vst.msk [vmem:[%s198 + $0xd8] sm:$0xff] %vm746, %v723
      %775 = vst.msk [vmem:[%s198 + $0xe0] sm:$0xff] %vm746, %v728
      %776 = vst.msk [vmem:[%s198 + $0xe8] sm:$0xff] %vm746, %v733
      %777 = vst.msk [vmem:[%s198 + $0xf0] sm:$0xff] %vm746, %v738
      %778 = vst.msk [vmem:[%s198 + $0xf8] sm:$0xff] %vm746, %v743
      %p779 = scmp.lt.s32.totalorder %s18, 1
      %s780 = scalar_select %p779, %s18, 1
      %p781 = scmp.lt.s32.totalorder %s19, 0
      %s782 = scalar_select %p781, %s19, 0
      %s783 = smul.addr %s780, 32
      %s784 = sadd.s32 %s782, %s783
      %s785 = smul.addr %s784, 8
      %s786 = scalar_lea.vmem %s3, %s785
      // Predicated region
      $region33: #{small_fpn_forward.1} parent=31 // pred_check
        %p787 = pneg %p116
      $region34: #{small_fpn_forward.1} parent=31 // pred_check_branch
        %789 = sbr.rel (%p787) target = $region36
      $region35: #{small_fpn_forward.1} parent=31 // pred_region
        _
      $region36: #{small_fpn_forward.1} parent=31 // pred_fallthru
        _
    $region32: #{small_fpn_forward.1} parent=5 // pred_fallthru
      _
    %p790 = scmp.le.s32.totalorder 2, %s9
    // Predicated region
    $region37: #{small_fpn_forward.1} parent=5 // pred_check
      %p791 = pneg %p790
    $region38: #{small_fpn_forward.1} parent=5 // pred_check_branch
      %793 = sbr.rel (%p791) target = $region40
    $region39: #{small_fpn_forward.1} parent=5 // pred_region
      %s794 = ssub.s32 %s9, 2
      // Predicated region
      $region41: #{small_fpn_forward.1} parent=39 // pred_check
        %p795 = pneg %p122
      $region42: #{small_fpn_forward.1} parent=39 // pred_check_branch
        %797 = sbr.rel (%p795) target = $region44
      $region43: #{small_fpn_forward.1} parent=39 // pred_region
        %p798 = scmp.lt.s32.totalorder %s20, 1
        %s799 = scalar_select %p798, %s20, 1
        %p800 = scmp.lt.s32.totalorder %s21, 0
        %s801 = scalar_select %p800, %s21, 0
        %s802 = smul.addr %s799, 32
        %s803 = sadd.s32 %s801, %s802
        %s804 = smul.addr %s803, 8
        %s805 = scalar_lea.vmem %s3, %s804
      $region44: #{small_fpn_forward.1} parent=39 // pred_fallthru
        _
    $region40: #{small_fpn_forward.1} parent=5 // pred_fallthru
      _
  $region6: #{small_fpn_forward.1} parent=0 // loop_footer
    %s13 = sadd.s32 1, %s9
  $region7: #{small_fpn_forward.1} parent=0 // loop_footer_branch
    %8 = sbr.rel target = $region3
  $region8: #{small_fpn_forward.1} parent=0 // loop_exit
    _

</llo_original>
